<compile_context>
chip_gen: v6e
topology: v6e:2x2x1
jax: 0.10.0
libtpu: 0.0.40
codegen_flags: <defaults>
</compile_context>

<pallas_src>
import math

import jax
import jax.numpy as jnp
from jax.experimental import pallas as pl
from jax.experimental.pallas import tpu as pltpu

IN_FEATURES = 28 * 28   # 784
HIDDEN = 256
OUT_FEATURES = 1

DEFAULT_TILE_B = 4096                # amortizes per-grid-step overhead
TILE_ALIGN = 16                      # bf16 packed sublane tile
VMEM_LIMIT_BYTES = 48 * 1024 * 1024  # fits v7x (64 MiB physical) with headroom


def _round_up(n, m):
    return ((n + m - 1) // m) * m


def _stream_dtype_for_backend():
    """f32 streaming + in-kernel bf16 cast on v6e/v7x (removes a wrapper-side
    HBM round trip); bf16 streaming on v5e where HBM bandwidth is the binding
    constraint and f32 streaming would be a ~60% regression."""
    try:
        kind = jax.devices()[0].device_kind.lower()
    except Exception:
        return jnp.float32
    if "v5 lite" in kind or "v5e" in kind or "v5lite" in kind:
        return jnp.bfloat16
    return jnp.float32


def mlp_kernel(x_ref, w1_ref, b1_ref, w2_ref, b2_ref, o_ref):
    # x_ref:  (TILE_B, 784) f32 or bf16    w1_ref: (784, 256) bf16
    # b1_ref: (1, 256) f32                 w2_ref: (1, 256)   f32
    # b2_ref: (1,) f32 in SMEM             o_ref:  (TILE_B, 1) f32
    x = x_ref[...]
    if x.dtype != jnp.bfloat16:
        x = x.astype(jnp.bfloat16)     # in-kernel cast (VPU): no extra HBM pass
    h = jnp.dot(x, w1_ref[...], preferred_element_type=jnp.float32)
    h = jnp.maximum(h + b1_ref[...], 0.0)                       # bias + ReLU (f32)
    # 256 -> 1 projection on VPU/XLU: broadcast multiply + cross-lane reduce.
    out = jnp.sum(h * w2_ref[...], axis=-1, keepdims=True) + b2_ref[0]
    o_ref[...] = out.astype(o_ref.dtype)


def prepare_params(w1, b1, w2, b2):
    """One-time parameter prep (hoisted out of the per-call path)."""
    w1_bf16 = w1.astype(jnp.bfloat16)                        # (784, 256)
    b1_f32 = b1.reshape(1, HIDDEN).astype(jnp.float32)       # (1, 256)
    w2_row = w2.reshape(1, HIDDEN).astype(jnp.float32)       # (256, 1) -> (1, 256)
    b2_scalar = b2.reshape(1).astype(jnp.float32)            # SMEM scalar
    return w1_bf16, b1_f32, w2_row, b2_scalar


def neural_network_forward(x, w1_bf16, b1_f32, w2_row, b2_scalar, *,
                           tile_b=DEFAULT_TILE_B, stream_dtype=None):
    """x: (B, 28, 28) float32 -> logits (B, 1) float32."""
    B = x.shape[0]
    x_flat = x.reshape(B, -1)                 # nn.Flatten (start_dim=1)
    assert x_flat.shape[1] == IN_FEATURES

    if stream_dtype is None:
        stream_dtype = _stream_dtype_for_backend()
    if x_flat.dtype != stream_dtype:
        # Only taken on the v5e path (bf16 streaming); on v6e/v7x x stays f32
        # and the cast happens inside the kernel.
        x_flat = x_flat.astype(stream_dtype)

    # Tile sizing: multiple of 16 (bf16 sublane packing), capped by the batch.
    b_rounded = _round_up(B, TILE_ALIGN)
    tile_b = max(TILE_ALIGN, min(_round_up(tile_b, TILE_ALIGN), b_rounded))
    # Split into >= 2 tiles when the batch allows it so the "parallel" grid
    # axis can span both TensorCores on v7x (negligible cost on 1-TC chips).
    if b_rounded >= 2 * TILE_ALIGN:
        tile_b = min(tile_b, _round_up(pl.cdiv(b_rounded, 2), TILE_ALIGN))
    num_tiles = pl.cdiv(b_rounded, tile_b)
    b_pad = num_tiles * tile_b
    if b_pad != B:
        # Only hit when B is not tile-aligned (typical batches avoid the copy).
        x_flat = jnp.pad(x_flat, ((0, b_pad - B), (0, 0)))

    out = pl.pallas_call(
        mlp_kernel,
        out_shape=jax.ShapeDtypeStruct((b_pad, OUT_FEATURES), jnp.float32),
        grid=(num_tiles,),
        in_specs=[
            pl.BlockSpec((tile_b, IN_FEATURES), lambda i: (i, 0)),   # streamed x
            pl.BlockSpec((IN_FEATURES, HIDDEN), lambda i: (0, 0)),   # resident W1
            pl.BlockSpec((1, HIDDEN), lambda i: (0, 0)),             # resident b1
            pl.BlockSpec((1, HIDDEN), lambda i: (0, 0)),             # resident W2 row
            pl.BlockSpec(memory_space=pltpu.MemorySpace.SMEM),       # b2 scalar
        ],
        out_specs=pl.BlockSpec((tile_b, OUT_FEATURES), lambda i: (i, 0)),
        compiler_params=pltpu.CompilerParams(
            dimension_semantics=("parallel",),
            vmem_limit_bytes=VMEM_LIMIT_BYTES,
        ),
    )(x_flat, w1_bf16, b1_f32, w2_row, b2_scalar)

    return out[:B]


def init_params(key):
    """Deterministic init matching PyTorch nn.Linear default
    (U(-1/sqrt(fan_in), 1/sqrt(fan_in)) for both weight and bias)."""
    k1, k2, k3, k4 = jax.random.split(key, 4)
    bound1 = 1.0 / math.sqrt(IN_FEATURES)
    bound2 = 1.0 / math.sqrt(HIDDEN)
    # Stored transposed vs. torch (in, out) so the kernel does x @ W directly.
    w1 = jax.random.uniform(k1, (IN_FEATURES, HIDDEN), jnp.float32, -bound1, bound1)
    b1 = jax.random.uniform(k2, (1, HIDDEN), jnp.float32, -bound1, bound1)
    w2 = jax.random.uniform(k3, (HIDDEN, OUT_FEATURES), jnp.float32, -bound2, bound2)
    b2 = jax.random.uniform(k4, (1, OUT_FEATURES), jnp.float32, -bound2, bound2)
    return w1, b1, w2, b2


if __name__ == "__main__":
    key = jax.random.PRNGKey(0)
    kx, kp = jax.random.split(key)

    B = 2
    x = jax.random.normal(kx, (B, 28, 28), jnp.float32)
    w1, b1, w2, b2 = init_params(kp)

    params = prepare_params(w1, b1, w2, b2)   # one-time, outside the hot path
    logits = neural_network_forward(x, *params)
    logits = jax.block_until_ready(logits)
    assert logits.shape == (B, OUT_FEATURES)

    x_flat = x.reshape(B, -1)

    # Reference matching the kernel's bf16-input / f32-accumulate path (tight).
    h_ref = jnp.dot(x_flat.astype(jnp.bfloat16), w1.astype(jnp.bfloat16),
                    preferred_element_type=jnp.float32)
    ref_bf16 = jnp.maximum(h_ref + b1, 0.0) @ w2 + b2
    assert jnp.allclose(logits, ref_bf16, atol=1e-3, rtol=1e-3)

    # Full-f32 PyTorch-equivalent reference (loose: bf16 quantization of x/W1).
    ref_f32 = jnp.maximum(x_flat @ w1 + b1, 0.0) @ w2 + b2
    assert jnp.allclose(logits, ref_f32, atol=5e-2, rtol=5e-2)

    print("KERNEL_OK")
</pallas_src>

<mosaic_0001>
module attributes {stable_mosaic.version = 11 : i64} {
  func.func @mlp_kernel(%arg0: i32, %arg1: memref<16x784xf32, #tpu.memory_space<vmem>>, %arg2: memref<784x256xbf16, #tpu.memory_space<vmem>>, %arg3: memref<1x256xf32, #tpu.memory_space<vmem>>, %arg4: memref<1x256xf32, #tpu.memory_space<vmem>>, %arg5: memref<1xf32, #tpu.memory_space<smem>>, %arg6: memref<16x1xf32, #tpu.memory_space<vmem>>) attributes {dimension_semantics = [#tpu.dimension_semantics<parallel>], iteration_bounds = array<i64: 1>, scalar_prefetch = 0 : i64, scratch_operands = 0 : i64, tpu.core_type = #tpu.core_type<tc>, window_params = [{transform_indices = @transform_0, window_bounds = array<i64: 16, 784>}, {pipeline_mode = #tpu.pipeline_mode<synchronous>, transform_indices = @transform_1, window_bounds = array<i64: 784, 256>}, {pipeline_mode = #tpu.pipeline_mode<synchronous>, transform_indices = @transform_2, window_bounds = array<i64: 1, 256>}, {pipeline_mode = #tpu.pipeline_mode<synchronous>, transform_indices = @transform_3, window_bounds = array<i64: 1, 256>}, {transform_indices = @transform_4, window_bounds = array<i64: 1>}, {transform_indices = @transform_5, window_bounds = array<i64: 16, 1>}]} {
    %c0 = arith.constant 0 : index
    %c0_0 = arith.constant 0 : index
    %0 = vector.load %arg1[%c0, %c0_0] : memref<16x784xf32, #tpu.memory_space<vmem>>, vector<16x784xf32>
    %1 = arith.truncf %0 : vector<16x784xf32> to vector<16x784xbf16>
    %c0_1 = arith.constant 0 : index
    %c0_2 = arith.constant 0 : index
    %2 = vector.load %arg2[%c0_1, %c0_2] : memref<784x256xbf16, #tpu.memory_space<vmem>>, vector<784x256xbf16>
    %cst = arith.constant dense<0.000000e+00> : vector<16x256xf32>
    %3 = tpu.matmul %1, %2, %cst {dimension_numbers = #tpu.dot_dimension_numbers<[1], [0], [0], [1], [0, 0, 1, 1], [], []>} : vector<16x784xbf16>, vector<784x256xbf16>, vector<16x256xf32> -> vector<16x256xf32>
    %c0_3 = arith.constant 0 : index
    %c0_4 = arith.constant 0 : index
    %4 = vector.load %arg3[%c0_3, %c0_4] : memref<1x256xf32, #tpu.memory_space<vmem>>, vector<1x256xf32>
    %5 = vector.broadcast %4 : vector<1x256xf32> to vector<16x256xf32>
    %6 = arith.addf %3, %5 : vector<16x256xf32>
    %cst_5 = arith.constant 0.000000e+00 : f32
    %7 = vector.broadcast %cst_5 : f32 to vector<16x256xf32>
    %8 = arith.maximumf %6, %7 : vector<16x256xf32>
    %c0_6 = arith.constant 0 : index
    %c0_7 = arith.constant 0 : index
    %9 = vector.load %arg4[%c0_6, %c0_7] : memref<1x256xf32, #tpu.memory_space<vmem>>, vector<1x256xf32>
    %10 = vector.broadcast %9 : vector<1x256xf32> to vector<16x256xf32>
    %11 = arith.mulf %8, %10 : vector<16x256xf32>
    %cst_8 = arith.constant dense<0.000000e+00> : vector<16xf32>
    %12 = vector.multi_reduction <add>, %11, %cst_8 [1] : vector<16x256xf32> to vector<16xf32>
    %13 = vector.shape_cast %12 : vector<16xf32> to vector<16x1xf32>
    %c0_9 = arith.constant 0 : index
    %14 = memref.load %arg5[%c0_9] : memref<1xf32, #tpu.memory_space<smem>>
    %15 = vector.broadcast %14 : f32 to vector<16x1xf32>
    %16 = arith.addf %13, %15 : vector<16x1xf32>
    %c0_10 = arith.constant 0 : index
    %c0_11 = arith.constant 0 : index
    %17 = vector.load %arg6[%c0_10, %c0_11] : memref<16x1xf32, #tpu.memory_space<vmem>>, vector<16x1xf32>
    tpu.vector_store %arg6[%c0_10, %c0_11], %16 {strides = array<i32>} : memref<16x1xf32, #tpu.memory_space<vmem>>, vector<16x1xf32>,
    return
  }
  func.func @transform_0(%arg0: i32) -> (i32, i32) {
    %c0_i32 = arith.constant 0 : i32
    %c0_i32_0 = arith.constant 0 : i32
    return %arg0, %c0_i32 : i32, i32
  }
  func.func @transform_1(%arg0: i32) -> (i32, i32) {
    %c0_i32 = arith.constant 0 : i32
    %c0_i32_0 = arith.constant 0 : i32
    %c0_i32_1 = arith.constant 0 : i32
    return %c0_i32, %c0_i32_0 : i32, i32
  }
  func.func @transform_2(%arg0: i32) -> (i32, i32) {
    %c0_i32 = arith.constant 0 : i32
    %c0_i32_0 = arith.constant 0 : i32
    %c0_i32_1 = arith.constant 0 : i32
    return %c0_i32, %c0_i32_0 : i32, i32
  }
  func.func @transform_3(%arg0: i32) -> (i32, i32) {
    %c0_i32 = arith.constant 0 : i32
    %c0_i32_0 = arith.constant 0 : i32
    %c0_i32_1 = arith.constant 0 : i32
    return %c0_i32, %c0_i32_0 : i32, i32
  }
  func.func @transform_4(%arg0: i32) -> i32 {
    %c0_i32 = arith.constant 0 : i32
    %c0_i32_0 = arith.constant 0 : i32
    return %c0_i32 : i32
  }
  func.func @transform_5(%arg0: i32) -> (i32, i32) {
    %c0_i32 = arith.constant 0 : i32
    %c0_i32_0 = arith.constant 0 : i32
    return %arg0, %c0_i32 : i32, i32
  }
}

</mosaic_0001>

<llo_original>
// kernel: tpu_custom_call.1
$region0: #{tpu_custom_call.1}
  #allocation0 [shape = 'u32[]', space=smem, size = 0x4, offset = 0x4, fixed_abs, tag = 'smem constant byte address 0x4 - core index']
  #allocation1 [shape = 'u32[144,128]{1,0:T(1,128)}', space=vmem, size = 0x12000, scoped, tag = 'internal scratch']
  #allocation2 [shape = 'f32[1]{0:T(128)S(6)}', space=smem, size = 0x200, scoped, tag = 'scoped memory for tpu_custom_call.1']
  %s0 = inlined_call_operand.hbm [shape: f32[16,784], index: 0, kind: input, shape index: {}]
  %s1 = inlined_call_operand.hbm [shape: bf16[784,256], index: 1, kind: input, shape index: {}]
  %s2 = inlined_call_operand.vmem [shape: f32[1,256], index: 2, kind: input, shape index: {}]
  %s3 = inlined_call_operand.vmem [shape: f32[1,256], index: 3, kind: input, shape index: {}]
  %s4 = inlined_call_operand.<no memory space> [shape: f32[1], index: 4, kind: input, shape index: {}]
  %s5 = inlined_call_operand.vmem [shape: f32[16,1], index: 5, kind: output, shape index: {}]
  %s6 = sld [smem:[#allocation0]]
  $region38: #{tpu_custom_call.1} parent=0
    _
  %s8 = ssub.s32 1, %s6
  %s9 = scalar_select 0, %s8, %s6
  %10 = sst [smem:[#allocation2]] %s4
  $region1: #{tpu_custom_call.1} parent=0
    #allocation3 [shape = 'u8[57344]{0}', space=vmem, size = 0xe000, scoped, tag = 'input window, operand 0, single buffered']
    #allocation4 [shape = 's32[1]{0}', space=sflag, size = 0x4, scoped, tag = 'scoped memory for tpu_custom_call.1']
    #allocation5 [shape = 'u8[401408]{0}', space=vmem, size = 0x62000, scoped, tag = 'input window, operand 1, single buffered']
    #allocation6 [shape = 's32[1]{0}', space=sflag, size = 0x4, scoped, tag = 'scoped memory for tpu_custom_call.1']
    %11 = vsyncpa [#allocation4], 0
    %12 = vsyncpa [#allocation6], 0
    // Predicated region
    $region2: #{tpu_custom_call.1} parent=1 // pred_check
      _
    $region3: #{tpu_custom_call.1} parent=1 // pred_check_branch
      %14 = sbr.rel (0) target = $region5
    $region4: #{tpu_custom_call.1} parent=1 // pred_region
      %s16 = ssub.s32 1792, 1792
      %17 = vsyncadd [#allocation4], %s16
      %s18 = sshll.u32 [#allocation3], 4
      %s19 = int_to_ptr.vmem [resolvable:$true] %s18
      %24 = dma.hbm_to_vmem [thread:$0]  %s0, 1792, %s19, [#allocation4], 896, 896, 56
    $region5: #{tpu_custom_call.1} parent=1 // pred_fallthru
      _
    // Predicated region
    $region6: #{tpu_custom_call.1} parent=1 // pred_check
      _
    $region7: #{tpu_custom_call.1} parent=1 // pred_check_branch
      %26 = sbr.rel (0) target = $region9
    $region8: #{tpu_custom_call.1} parent=1 // pred_region
      %s28 = ssub.s32 12544, 12544
      %29 = vsyncadd [#allocation6], %s28
      %s30 = sshll.u32 [#allocation5], 4
      %s31 = int_to_ptr.vmem [resolvable:$true] %s30
      %36 = dma.hbm_to_vmem [thread:$0]  %s1, 12544, %s31, [#allocation6], 128, 128, 8
    $region9: #{tpu_custom_call.1} parent=1 // pred_fallthru
      _
    // Predicated region
    $region10: #{tpu_custom_call.1} parent=1 // pred_check
      _
    $region11: #{tpu_custom_call.1} parent=1 // pred_check_branch
      %38 = sbr.rel (0) target = $region13
    $region12: #{tpu_custom_call.1} parent=1 // pred_region
      _
    $region13: #{tpu_custom_call.1} parent=1 // pred_fallthru
      _
    // Predicated region
    $region14: #{tpu_custom_call.1} parent=1 // pred_check
      _
    $region15: #{tpu_custom_call.1} parent=1 // pred_check_branch
      %40 = sbr.rel (0) target = $region17
    $region16: #{tpu_custom_call.1} parent=1 // pred_region
      _
    $region17: #{tpu_custom_call.1} parent=1 // pred_fallthru
      _
    // Predicated region
    $region18: #{tpu_custom_call.1} parent=1 // pred_check
      _
    $region19: #{tpu_custom_call.1} parent=1 // pred_check_branch
      %42 = sbr.rel (0) target = $region21
    $region20: #{tpu_custom_call.1} parent=1 // pred_region
      _
    $region21: #{tpu_custom_call.1} parent=1 // pred_fallthru
      _
    // Predicated region
    $region22: #{tpu_custom_call.1} parent=1 // pred_check
      _
    $region23: #{tpu_custom_call.1} parent=1 // pred_check_branch
      %44 = sbr.rel (0) target = $region25
    $region24: #{tpu_custom_call.1} parent=1 // pred_region
      %45 = dma.done [#allocation4], 1792
    $region25: #{tpu_custom_call.1} parent=1 // pred_fallthru
      _
    // Predicated region
    $region26: #{tpu_custom_call.1} parent=1 // pred_check
      _
    $region27: #{tpu_custom_call.1} parent=1 // pred_check_branch
      %47 = sbr.rel (0) target = $region29
    $region28: #{tpu_custom_call.1} parent=1 // pred_region
      %48 = dma.done [#allocation6], 12544
    $region29: #{tpu_custom_call.1} parent=1 // pred_fallthru
      _
    %v50 = vld [vmem:[#allocation3] sm:$0xff]
    %v51 = vld [vmem:[#allocation3 + $0x8] sm:$0xff]
    %v52 = vld [vmem:[#allocation3 + $0x10] sm:$0xff]
    %v53 = vld [vmem:[#allocation3 + $0x18] sm:$0xff]
    %v54 = vld [vmem:[#allocation3 + $0x20] sm:$0xff]
    %v55 = vld [vmem:[#allocation3 + $0x28] sm:$0xff]
    %v56 = vld [vmem:[#allocation3 + $0x30] sm:$0xff]
    %v57 = vld [vmem:[#allocation3 + $0x38] sm:$0xff]
    %v58 = vld [vmem:[#allocation3 + $0x40] sm:$0xff]
    %v59 = vld [vmem:[#allocation3 + $0x48] sm:$0xff]
    %v60 = vld [vmem:[#allocation3 + $0x50] sm:$0xff]
    %v61 = vld [vmem:[#allocation3 + $0x58] sm:$0xff]
    %v62 = vld [vmem:[#allocation3 + $0x60] sm:$0xff]
    %v63 = vld [vmem:[#allocation3 + $0x68] sm:$0xff]
    %v64 = vpack.c.bf16 %v57, %v50
    %v65 = vpack.c.bf16 %v58, %v51
    %v66 = vpack.c.bf16 %v59, %v52
    %v67 = vpack.c.bf16 %v60, %v53
    %v68 = vpack.c.bf16 %v61, %v54
    %v69 = vpack.c.bf16 %v62, %v55
    %v70 = vpack.c.bf16 %v63, %v56
    %v71 = vld [vmem:[#allocation5] sm:$0xff]
    %v72 = vld [vmem:[#allocation5 + $0x8] sm:$0xff]
    %v73 = vld [vmem:[#allocation5 + $0x10] sm:$0xff]
    %v74 = vld [vmem:[#allocation5 + $0x18] sm:$0xff]
    %v75 = vld [vmem:[#allocation5 + $0x20] sm:$0xff]
    %v76 = vld [vmem:[#allocation5 + $0x28] sm:$0xff]
    %v77 = vld [vmem:[#allocation5 + $0x30] sm:$0xff]
    %v78 = vld [vmem:[#allocation5 + $0x38] sm:$0xff]
    %v79 = vld [vmem:[#allocation5 + $0x40] sm:$0xff]
    %v80 = vld [vmem:[#allocation5 + $0x48] sm:$0xff]
    %v81 = vld [vmem:[#allocation5 + $0x50] sm:$0xff]
    %v82 = vld [vmem:[#allocation5 + $0x58] sm:$0xff]
    %v83 = vld [vmem:[#allocation5 + $0x60] sm:$0xff]
    %v84 = vld [vmem:[#allocation5 + $0x68] sm:$0xff]
    %v85 = vld [vmem:[#allocation5 + $0x70] sm:$0xff]
    %v86 = vld [vmem:[#allocation5 + $0x78] sm:$0xff]
    %v87 = vld [vmem:[#allocation5 + $0x80] sm:$0xff]
    %v88 = vld [vmem:[#allocation5 + $0x88] sm:$0xff]
    %v89 = vld [vmem:[#allocation5 + $0x90] sm:$0xff]
    %v90 = vld [vmem:[#allocation5 + $0x98] sm:$0xff]
    %v91 = vld [vmem:[#allocation5 + $0xa0] sm:$0xff]
    %v92 = vld [vmem:[#allocation5 + $0xa8] sm:$0xff]
    %v93 = vld [vmem:[#allocation5 + $0xb0] sm:$0xff]
    %v94 = vld [vmem:[#allocation5 + $0xb8] sm:$0xff]
    %v95 = vld [vmem:[#allocation5 + $0xc0] sm:$0xff]
    %v96 = vld [vmem:[#allocation5 + $0xc8] sm:$0xff]
    %v97 = vld [vmem:[#allocation5 + $0xd0] sm:$0xff]
    %v98 = vld [vmem:[#allocation5 + $0xd8] sm:$0xff]
    %v99 = vld [vmem:[#allocation5 + $0xe0] sm:$0xff]
    %v100 = vld [vmem:[#allocation5 + $0xe8] sm:$0xff]
    %v101 = vld [vmem:[#allocation5 + $0xf0] sm:$0xff]
    %v102 = vld [vmem:[#allocation5 + $0xf8] sm:$0xff]
    %v103 = vld [vmem:[#allocation5 + $0x100] sm:$0xff]
    %v104 = vld [vmem:[#allocation5 + $0x108] sm:$0xff]
    %v105 = vld [vmem:[#allocation5 + $0x110] sm:$0xff]
    %v106 = vld [vmem:[#allocation5 + $0x118] sm:$0xff]
    %v107 = vld [vmem:[#allocation5 + $0x120] sm:$0xff]
    %v108 = vld [vmem:[#allocation5 + $0x128] sm:$0xff]
    %v109 = vld [vmem:[#allocation5 + $0x130] sm:$0xff]
    %v110 = vld [vmem:[#allocation5 + $0x138] sm:$0xff]
    %v111 = vld [vmem:[#allocation5 + $0x140] sm:$0xff]
    %v112 = vld [vmem:[#allocation5 + $0x148] sm:$0xff]
    %v113 = vld [vmem:[#allocation5 + $0x150] sm:$0xff]
    %v114 = vld [vmem:[#allocation5 + $0x158] sm:$0xff]
    %v115 = vld [vmem:[#allocation5 + $0x160] sm:$0xff]
    %v116 = vld [vmem:[#allocation5 + $0x168] sm:$0xff]
    %v117 = vld [vmem:[#allocation5 + $0x170] sm:$0xff]
    %v118 = vld [vmem:[#allocation5 + $0x178] sm:$0xff]
    %v119 = vld [vmem:[#allocation5 + $0x180] sm:$0xff]
    %v120 = vld [vmem:[#allocation5 + $0x188] sm:$0xff]
    %v121 = vld [vmem:[#allocation5 + $0x190] sm:$0xff]
    %v122 = vld [vmem:[#allocation5 + $0x198] sm:$0xff]
    %v123 = vld [vmem:[#allocation5 + $0x1a0] sm:$0xff]
    %v124 = vld [vmem:[#allocation5 + $0x1a8] sm:$0xff]
    %v125 = vld [vmem:[#allocation5 + $0x1b0] sm:$0xff]
    %v126 = vld [vmem:[#allocation5 + $0x1b8] sm:$0xff]
    %v127 = vld [vmem:[#allocation5 + $0x1c0] sm:$0xff]
    %v128 = vld [vmem:[#allocation5 + $0x1c8] sm:$0xff]
    %v129 = vld [vmem:[#allocation5 + $0x1d0] sm:$0xff]
    %v130 = vld [vmem:[#allocation5 + $0x1d8] sm:$0xff]
    %v131 = vld [vmem:[#allocation5 + $0x1e0] sm:$0xff]
    %v132 = vld [vmem:[#allocation5 + $0x1e8] sm:$0xff]
    %v133 = vld [vmem:[#allocation5 + $0x1f0] sm:$0xff]
    %v134 = vld [vmem:[#allocation5 + $0x1f8] sm:$0xff]
    %v135 = vld [vmem:[#allocation5 + $0x200] sm:$0xff]
    %v136 = vld [vmem:[#allocation5 + $0x208] sm:$0xff]
    %v137 = vld [vmem:[#allocation5 + $0x210] sm:$0xff]
    %v138 = vld [vmem:[#allocation5 + $0x218] sm:$0xff]
    %v139 = vld [vmem:[#allocation5 + $0x220] sm:$0xff]
    %v140 = vld [vmem:[#allocation5 + $0x228] sm:$0xff]
    %v141 = vld [vmem:[#allocation5 + $0x230] sm:$0xff]
    %v142 = vld [vmem:[#allocation5 + $0x238] sm:$0xff]
    %v143 = vld [vmem:[#allocation5 + $0x240] sm:$0xff]
    %v144 = vld [vmem:[#allocation5 + $0x248] sm:$0xff]
    %v145 = vld [vmem:[#allocation5 + $0x250] sm:$0xff]
    %v146 = vld [vmem:[#allocation5 + $0x258] sm:$0xff]
    %v147 = vld [vmem:[#allocation5 + $0x260] sm:$0xff]
    %v148 = vld [vmem:[#allocation5 + $0x268] sm:$0xff]
    %v149 = vld [vmem:[#allocation5 + $0x270] sm:$0xff]
    %v150 = vld [vmem:[#allocation5 + $0x278] sm:$0xff]
    %v151 = vld [vmem:[#allocation5 + $0x280] sm:$0xff]
    %v152 = vld [vmem:[#allocation5 + $0x288] sm:$0xff]
    %v153 = vld [vmem:[#allocation5 + $0x290] sm:$0xff]
    %v154 = vld [vmem:[#allocation5 + $0x298] sm:$0xff]
    %v155 = vld [vmem:[#allocation5 + $0x2a0] sm:$0xff]
    %v156 = vld [vmem:[#allocation5 + $0x2a8] sm:$0xff]
    %v157 = vld [vmem:[#allocation5 + $0x2b0] sm:$0xff]
    %v158 = vld [vmem:[#allocation5 + $0x2b8] sm:$0xff]
    %v159 = vld [vmem:[#allocation5 + $0x2c0] sm:$0xff]
    %v160 = vld [vmem:[#allocation5 + $0x2c8] sm:$0xff]
    %v161 = vld [vmem:[#allocation5 + $0x2d0] sm:$0xff]
    %v162 = vld [vmem:[#allocation5 + $0x2d8] sm:$0xff]
    %v163 = vld [vmem:[#allocation5 + $0x2e0] sm:$0xff]
    %v164 = vld [vmem:[#allocation5 + $0x2e8] sm:$0xff]
    %v165 = vld [vmem:[#allocation5 + $0x2f0] sm:$0xff]
    %v166 = vld [vmem:[#allocation5 + $0x2f8] sm:$0xff]
    %v167 = vld [vmem:[#allocation5 + $0x300] sm:$0xff]
    %v168 = vld [vmem:[#allocation5 + $0x308] sm:$0xff]
    %v169 = vld [vmem:[%s2] sm:$0x3]
    %v171 = vlaneseq
    %v172 = vshrl.u32 %v171, 7
    %v173 = vsub.s32 0, %v172
    %v174 = vrot.slane %v169, %v173
    %v175 = vlaneseq
    %v176 = vshrl.u32 %v175, 7
    %v177 = vsub.s32 1, %v176
    %v178 = vrot.slane %v169, %v177
    %v279 = vunpack.c.l.b16 %v71
    %v280 = vunpack.c.h.b16 %v71
    %v281 = vunpack.c.l.b16 %v72
    %v282 = vunpack.c.h.b16 %v72
    %v283 = vunpack.c.l.b16 %v73
    %v284 = vunpack.c.h.b16 %v73
    %v285 = vunpack.c.l.b16 %v74
    %v286 = vunpack.c.h.b16 %v74
    %v287 = vunpack.c.l.b16 %v75
    %v288 = vunpack.c.h.b16 %v75
    %v289 = vunpack.c.l.b16 %v76
    %v290 = vunpack.c.h.b16 %v76
    %v291 = vunpack.c.l.b16 %v77
    %v292 = vunpack.c.h.b16 %v77
    %v293 = vunpack.c.l.b16 %v78
    %v294 = vunpack.c.h.b16 %v78
    %v295 = vunpack.c.l.b16 %v79
    %v296 = vunpack.c.h.b16 %v79
    %v297 = vunpack.c.l.b16 %v80
    %v298 = vunpack.c.h.b16 %v80
    %v299 = vunpack.c.l.b16 %v81
    %v300 = vunpack.c.h.b16 %v81
    %v301 = vunpack.c.l.b16 %v82
    %v302 = vunpack.c.h.b16 %v82
    %v303 = vunpack.c.l.b16 %v83
    %v304 = vunpack.c.h.b16 %v83
    %v305 = vunpack.c.l.b16 %v84
    %v306 = vunpack.c.h.b16 %v84
    %v307 = vunpack.c.l.b16 %v85
    %v308 = vunpack.c.h.b16 %v85
    %v309 = vunpack.c.l.b16 %v86
    %v310 = vunpack.c.h.b16 %v86
    %v311 = vunpack.c.l.b16 %v87
    %v312 = vunpack.c.h.b16 %v87
    %v313 = vunpack.c.l.b16 %v88
    %v314 = vunpack.c.h.b16 %v88
    %v315 = vunpack.c.l.b16 %v89
    %v316 = vunpack.c.h.b16 %v89
    %v317 = vunpack.c.l.b16 %v90
    %v318 = vunpack.c.h.b16 %v90
    %v319 = vunpack.c.l.b16 %v91
    %v320 = vunpack.c.h.b16 %v91
    %v321 = vunpack.c.l.b16 %v92
    %v322 = vunpack.c.h.b16 %v92
    %v323 = vunpack.c.l.b16 %v93
    %v324 = vunpack.c.h.b16 %v93
    %v325 = vunpack.c.l.b16 %v94
    %v326 = vunpack.c.h.b16 %v94
    %v327 = vunpack.c.l.b16 %v95
    %v328 = vunpack.c.h.b16 %v95
    %v329 = vunpack.c.l.b16 %v96
    %v330 = vunpack.c.h.b16 %v96
    %v331 = vunpack.c.l.b16 %v97
    %v332 = vunpack.c.h.b16 %v97
    %v333 = vunpack.c.l.b16 %v98
    %v334 = vunpack.c.h.b16 %v98
    %v335 = vunpack.c.l.b16 %v99
    %v336 = vunpack.c.h.b16 %v99
    %v337 = vunpack.c.l.b16 %v100
    %v338 = vunpack.c.h.b16 %v100
    %v339 = vunpack.c.l.b16 %v101
    %v340 = vunpack.c.h.b16 %v101
    %v341 = vunpack.c.l.b16 %v102
    %v342 = vunpack.c.h.b16 %v102
    %v343 = vunpack.c.l.b16 %v103
    %v344 = vunpack.c.h.b16 %v103
    %v345 = vunpack.c.l.b16 %v104
    %v346 = vunpack.c.h.b16 %v104
    %v347 = vunpack.c.l.b16 %v105
    %v348 = vunpack.c.h.b16 %v105
    %v349 = vunpack.c.l.b16 %v106
    %v350 = vunpack.c.h.b16 %v106
    %v351 = vunpack.c.l.b16 %v107
    %v352 = vunpack.c.h.b16 %v107
    %v353 = vunpack.c.l.b16 %v108
    %v354 = vunpack.c.h.b16 %v108
    %v355 = vunpack.c.l.b16 %v109
    %v356 = vunpack.c.h.b16 %v109
    %v357 = vunpack.c.l.b16 %v110
    %v358 = vunpack.c.h.b16 %v110
    %v359 = vunpack.c.l.b16 %v111
    %v360 = vunpack.c.h.b16 %v111
    %v361 = vunpack.c.l.b16 %v112
    %v362 = vunpack.c.h.b16 %v112
    %v363 = vunpack.c.l.b16 %v113
    %v364 = vunpack.c.h.b16 %v113
    %v365 = vunpack.c.l.b16 %v114
    %v366 = vunpack.c.h.b16 %v114
    %v367 = vunpack.c.l.b16 %v115
    %v368 = vunpack.c.h.b16 %v115
    %v369 = vunpack.c.l.b16 %v116
    %v370 = vunpack.c.h.b16 %v116
    %v371 = vunpack.c.l.b16 %v117
    %v372 = vunpack.c.h.b16 %v117
    %v373 = vunpack.c.l.b16 %v118
    %v374 = vunpack.c.h.b16 %v118
    %v375 = vunpack.c.l.b16 %v119
    %v376 = vunpack.c.h.b16 %v119
    %v377 = vunpack.c.l.b16 %v120
    %v378 = vunpack.c.h.b16 %v120
    %v379 = vunpack.c.l.b16 %v121
    %v380 = vunpack.c.h.b16 %v121
    %v381 = vunpack.c.l.b16 %v122
    %v382 = vunpack.c.h.b16 %v122
    %v383 = vunpack.c.l.b16 %v123
    %v384 = vunpack.c.h.b16 %v123
    %v385 = vunpack.c.l.b16 %v124
    %v386 = vunpack.c.h.b16 %v124
    %v387 = vunpack.c.l.b16 %v125
    %v388 = vunpack.c.h.b16 %v125
    %v389 = vunpack.c.l.b16 %v126
    %v390 = vunpack.c.h.b16 %v126
    %v391 = vunpack.c.l.b16 %v127
    %v392 = vunpack.c.h.b16 %v127
    %v393 = vunpack.c.l.b16 %v128
    %v394 = vunpack.c.h.b16 %v128
    %v395 = vunpack.c.l.b16 %v129
    %v396 = vunpack.c.h.b16 %v129
    %v397 = vunpack.c.l.b16 %v130
    %v398 = vunpack.c.h.b16 %v130
    %v399 = vunpack.c.l.b16 %v131
    %v400 = vunpack.c.h.b16 %v131
    %v401 = vunpack.c.l.b16 %v132
    %v402 = vunpack.c.h.b16 %v132
    %v403 = vunpack.c.l.b16 %v133
    %v404 = vunpack.c.h.b16 %v133
    %v405 = vunpack.c.l.b16 %v134
    %v406 = vunpack.c.h.b16 %v134
    %v407 = vunpack.c.l.b16 %v135
    %v408 = vunpack.c.h.b16 %v135
    %v409 = vunpack.c.l.b16 %v136
    %v410 = vunpack.c.h.b16 %v136
    %v411 = vunpack.c.l.b16 %v137
    %v412 = vunpack.c.h.b16 %v137
    %v413 = vunpack.c.l.b16 %v138
    %v414 = vunpack.c.h.b16 %v138
    %v415 = vunpack.c.l.b16 %v139
    %v416 = vunpack.c.h.b16 %v139
    %v417 = vunpack.c.l.b16 %v140
    %v418 = vunpack.c.h.b16 %v140
    %v419 = vunpack.c.l.b16 %v141
    %v420 = vunpack.c.h.b16 %v141
    %v421 = vunpack.c.l.b16 %v142
    %v422 = vunpack.c.h.b16 %v142
    %v423 = vunpack.c.l.b16 %v143
    %v424 = vunpack.c.h.b16 %v143
    %v425 = vunpack.c.l.b16 %v144
    %v426 = vunpack.c.h.b16 %v144
    %v427 = vunpack.c.l.b16 %v145
    %v428 = vunpack.c.h.b16 %v145
    %v429 = vunpack.c.l.b16 %v146
    %v430 = vunpack.c.h.b16 %v146
    %v431 = vunpack.c.l.b16 %v147
    %v432 = vunpack.c.h.b16 %v147
    %v433 = vunpack.c.l.b16 %v148
    %v434 = vunpack.c.h.b16 %v148
    %v435 = vunpack.c.l.b16 %v149
    %v436 = vunpack.c.h.b16 %v149
    %v437 = vunpack.c.l.b16 %v150
    %v438 = vunpack.c.h.b16 %v150
    %v439 = vunpack.c.l.b16 %v151
    %v440 = vunpack.c.h.b16 %v151
    %v441 = vunpack.c.l.b16 %v152
    %v442 = vunpack.c.h.b16 %v152
    %v443 = vunpack.c.l.b16 %v153
    %v444 = vunpack.c.h.b16 %v153
    %v445 = vunpack.c.l.b16 %v154
    %v446 = vunpack.c.h.b16 %v154
    %v447 = vunpack.c.l.b16 %v155
    %v448 = vunpack.c.h.b16 %v155
    %v449 = vunpack.c.l.b16 %v156
    %v450 = vunpack.c.h.b16 %v156
    %v451 = vunpack.c.l.b16 %v157
    %v452 = vunpack.c.h.b16 %v157
    %v453 = vunpack.c.l.b16 %v158
    %v454 = vunpack.c.h.b16 %v158
    %v455 = vunpack.c.l.b16 %v159
    %v456 = vunpack.c.h.b16 %v159
    %v457 = vunpack.c.l.b16 %v160
    %v458 = vunpack.c.h.b16 %v160
    %v459 = vunpack.c.l.b16 %v161
    %v460 = vunpack.c.h.b16 %v161
    %v461 = vunpack.c.l.b16 %v162
    %v462 = vunpack.c.h.b16 %v162
    %v463 = vunpack.c.l.b16 %v163
    %v464 = vunpack.c.h.b16 %v163
    %v465 = vunpack.c.l.b16 %v164
    %v466 = vunpack.c.h.b16 %v164
    %v467 = vunpack.c.l.b16 %v165
    %v468 = vunpack.c.h.b16 %v165
    %v469 = vunpack.c.l.b16 %v166
    %v470 = vunpack.c.h.b16 %v166
    %v471 = vunpack.c.l.b16 %v167
    %v472 = vunpack.c.h.b16 %v167
    %v473 = vunpack.c.l.b16 %v168
    %v474 = vunpack.c.h.b16 %v168
    %v475 = vpack.c.b16 %v281, %v279
    %v476 = vpack.c.b16 %v282, %v280
    %v477 = vpack.c.b16 %v285, %v283
    %v478 = vpack.c.b16 %v286, %v284
    %v479 = vpack.c.b16 %v289, %v287
    %v480 = vpack.c.b16 %v290, %v288
    %v481 = vpack.c.b16 %v293, %v291
    %v482 = vpack.c.b16 %v294, %v292
    %v483 = vpack.c.b16 %v297, %v295
    %v484 = vpack.c.b16 %v298, %v296
    %v485 = vpack.c.b16 %v301, %v299
    %v486 = vpack.c.b16 %v302, %v300
    %v487 = vpack.c.b16 %v305, %v303
    %v488 = vpack.c.b16 %v306, %v304
    %v489 = vpack.c.b16 %v309, %v307
    %v490 = vpack.c.b16 %v310, %v308
    %v491 = vpack.c.b16 %v313, %v311
    %v492 = vpack.c.b16 %v314, %v312
    %v493 = vpack.c.b16 %v317, %v315
    %v494 = vpack.c.b16 %v318, %v316
    %v495 = vpack.c.b16 %v321, %v319
    %v496 = vpack.c.b16 %v322, %v320
    %v497 = vpack.c.b16 %v325, %v323
    %v498 = vpack.c.b16 %v326, %v324
    %v499 = vpack.c.b16 %v329, %v327
    %v500 = vpack.c.b16 %v330, %v328
    %v501 = vpack.c.b16 %v333, %v331
    %v502 = vpack.c.b16 %v334, %v332
    %v503 = vpack.c.b16 %v337, %v335
    %v504 = vpack.c.b16 %v338, %v336
    %v505 = vpack.c.b16 %v341, %v339
    %v506 = vpack.c.b16 %v342, %v340
    %v507 = vpack.c.b16 %v345, %v343
    %v508 = vpack.c.b16 %v346, %v344
    %v509 = vpack.c.b16 %v349, %v347
    %v510 = vpack.c.b16 %v350, %v348
    %v511 = vpack.c.b16 %v353, %v351
    %v512 = vpack.c.b16 %v354, %v352
    %v513 = vpack.c.b16 %v357, %v355
    %v514 = vpack.c.b16 %v358, %v356
    %v515 = vpack.c.b16 %v361, %v359
    %v516 = vpack.c.b16 %v362, %v360
    %v517 = vpack.c.b16 %v365, %v363
    %v518 = vpack.c.b16 %v366, %v364
    %v519 = vpack.c.b16 %v369, %v367
    %v520 = vpack.c.b16 %v370, %v368
    %v521 = vpack.c.b16 %v373, %v371
    %v522 = vpack.c.b16 %v374, %v372
    %v523 = vpack.c.b16 %v377, %v375
    %v524 = vpack.c.b16 %v378, %v376
    %v525 = vpack.c.b16 %v381, %v379
    %v526 = vpack.c.b16 %v382, %v380
    %v527 = vpack.c.b16 %v385, %v383
    %v528 = vpack.c.b16 %v386, %v384
    %v529 = vpack.c.b16 %v389, %v387
    %v530 = vpack.c.b16 %v390, %v388
    %v531 = vpack.c.b16 %v393, %v391
    %v532 = vpack.c.b16 %v394, %v392
    %v533 = vpack.c.b16 %v397, %v395
    %v534 = vpack.c.b16 %v398, %v396
    %v535 = vpack.c.b16 %v401, %v399
    %v536 = vpack.c.b16 %v402, %v400
    %v537 = vpack.c.b16 %v405, %v403
    %v538 = vpack.c.b16 %v406, %v404
    %v539 = vpack.c.b16 %v409, %v407
    %v540 = vpack.c.b16 %v410, %v408
    %v541 = vpack.c.b16 %v413, %v411
    %v542 = vpack.c.b16 %v414, %v412
    %v543 = vpack.c.b16 %v417, %v415
    %v544 = vpack.c.b16 %v418, %v416
    %v545 = vpack.c.b16 %v421, %v419
    %v546 = vpack.c.b16 %v422, %v420
    %v547 = vpack.c.b16 %v425, %v423
    %v548 = vpack.c.b16 %v426, %v424
    %v549 = vpack.c.b16 %v429, %v427
    %v550 = vpack.c.b16 %v430, %v428
    %v551 = vpack.c.b16 %v433, %v431
    %v552 = vpack.c.b16 %v434, %v432
    %v553 = vpack.c.b16 %v437, %v435
    %v554 = vpack.c.b16 %v438, %v436
    %v555 = vpack.c.b16 %v441, %v439
    %v556 = vpack.c.b16 %v442, %v440
    %v557 = vpack.c.b16 %v445, %v443
    %v558 = vpack.c.b16 %v446, %v444
    %v559 = vpack.c.b16 %v449, %v447
    %v560 = vpack.c.b16 %v450, %v448
    %v561 = vpack.c.b16 %v453, %v451
    %v562 = vpack.c.b16 %v454, %v452
    %v563 = vpack.c.b16 %v457, %v455
    %v564 = vpack.c.b16 %v458, %v456
    %v565 = vpack.c.b16 %v461, %v459
    %v566 = vpack.c.b16 %v462, %v460
    %v567 = vpack.c.b16 %v465, %v463
    %v568 = vpack.c.b16 %v466, %v464
    %v569 = vpack.c.b16 %v469, %v467
    %v570 = vpack.c.b16 %v470, %v468
    %v571 = vpack.c.b16 %v473, %v471
    %v572 = vpack.c.b16 %v474, %v472
    %vm671 = vcmask 130048
    %v673 = vsel %vm671, %v70, 0
    %675 = vmatprep.subr.bf16.mxu0 %v490
    %676 = vmatpush1.bf16.msra.mxu0 %v489
    %677 = vmatprep.subr.bf16.mxu0 %v488
    %678 = vmatpush1.bf16.msra.mxu0 %v487
    %679 = vmatprep.subr.bf16.mxu0 %v486
    %680 = vmatpush1.bf16.msra.mxu0 %v485
    %681 = vmatprep.subr.bf16.mxu0 %v484
    %682 = vmatpush1.bf16.msra.mxu0 %v483
    %683 = vmatprep.subr.bf16.mxu0 %v482
    %684 = vmatpush1.bf16.msra.mxu0 %v481
    %685 = vmatprep.subr.bf16.mxu0 %v480
    %686 = vmatpush1.bf16.msra.mxu0 %v479
    %687 = vmatprep.subr.bf16.mxu0 %v478
    %688 = vmatpush1.bf16.msra.mxu0 %v477
    %689 = vmatprep.subr.bf16.mxu0 %v476
    %690 = vmatpush1.bf16.msra.mxu0 %v475
    %691 = vmatprep.subr.bf16.mxu0 %v506
    %692 = vmatpush2.bf16.msra.mxu0 %v505
    %693 = vmatprep.subr.bf16.mxu0 %v504
    %694 = vmatpush2.bf16.msra.mxu0 %v503
    %695 = vmatprep.subr.bf16.mxu0 %v502
    %696 = vmatpush2.bf16.msra.mxu0 %v501
    %697 = vmatprep.subr.bf16.mxu0 %v500
    %698 = vmatpush2.bf16.msra.mxu0 %v499
    %699 = vmatprep.subr.bf16.mxu0 %v498
    %700 = vmatpush2.bf16.msra.mxu0 %v497
    %701 = vmatprep.subr.bf16.mxu0 %v496
    %702 = vmatpush2.bf16.msra.mxu0 %v495
    %703 = vmatprep.subr.bf16.mxu0 %v494
    %704 = vmatpush2.bf16.msra.mxu0 %v493
    %705 = vmatprep.subr.bf16.mxu0 %v492
    %706 = vmatpush2.bf16.msra.mxu0 %v491
    %707 = vmatprep.mubr.bf16.mxu0 %v65
    %708 = vmatmul.mubr.bf16.gmra.mxu0 %v64
    %v709 = vpop.f32.mrf.mxu0
    %v710 = vadd.f32 %v174, %v709
    %v711 = vpop.f32.mrf.mxu0
    %v712 = vadd.f32 %v178, %v711
    %v713 = vpop.f32.mrf.mxu0
    %v714 = vadd.f32 %v174, %v713
    %v715 = vpop.f32.mrf.mxu0
    %v716 = vadd.f32 %v178, %v715
    %717 = vdwg.mxu0
    %718 = vmatprep.subr.bf16.mxu0 %v522
    %719 = vmatpush1.bf16.msra.mxu0 %v521
    %720 = vmatprep.subr.bf16.mxu0 %v520
    %721 = vmatpush1.bf16.msra.mxu0 %v519
    %722 = vmatprep.subr.bf16.mxu0 %v518
    %723 = vmatpush1.bf16.msra.mxu0 %v517
    %724 = vmatprep.subr.bf16.mxu0 %v516
    %725 = vmatpush1.bf16.msra.mxu0 %v515
    %726 = vmatprep.subr.bf16.mxu0 %v514
    %727 = vmatpush1.bf16.msra.mxu0 %v513
    %728 = vmatprep.subr.bf16.mxu0 %v512
    %729 = vmatpush1.bf16.msra.mxu0 %v511
    %730 = vmatprep.subr.bf16.mxu0 %v510
    %731 = vmatpush1.bf16.msra.mxu0 %v509
    %732 = vmatprep.subr.bf16.mxu0 %v508
    %733 = vmatpush1.bf16.msra.mxu0 %v507
    %734 = vmatprep.subr.bf16.mxu0 %v538
    %735 = vmatpush2.bf16.msra.mxu0 %v537
    %736 = vmatprep.subr.bf16.mxu0 %v536
    %737 = vmatpush2.bf16.msra.mxu0 %v535
    %738 = vmatprep.subr.bf16.mxu0 %v534
    %739 = vmatpush2.bf16.msra.mxu0 %v533
    %740 = vmatprep.subr.bf16.mxu0 %v532
    %741 = vmatpush2.bf16.msra.mxu0 %v531
    %742 = vmatprep.subr.bf16.mxu0 %v530
    %743 = vmatpush2.bf16.msra.mxu0 %v529
    %744 = vmatprep.subr.bf16.mxu0 %v528
    %745 = vmatpush2.bf16.msra.mxu0 %v527
    %746 = vmatprep.subr.bf16.mxu0 %v526
    %747 = vmatpush2.bf16.msra.mxu0 %v525
    %748 = vmatprep.subr.bf16.mxu0 %v524
    %749 = vmatpush2.bf16.msra.mxu0 %v523
    %750 = vmatprep.mubr.bf16.mxu0 %v67
    %751 = vmatmul.mubr.bf16.gmra.mxu0 %v66
    %v752 = vpop.f32.mrf.mxu0
    %v753 = vadd.f32 %v710, %v752
    %v754 = vpop.f32.mrf.mxu0
    %v755 = vadd.f32 %v712, %v754
    %v756 = vpop.f32.mrf.mxu0
    %v757 = vadd.f32 %v714, %v756
    %v758 = vpop.f32.mrf.mxu0
    %v759 = vadd.f32 %v716, %v758
    %760 = vdwg.mxu0
    %761 = vmatprep.subr.bf16.mxu0 %v554
    %762 = vmatpush1.bf16.msra.mxu0 %v553
    %763 = vmatprep.subr.bf16.mxu0 %v552
    %764 = vmatpush1.bf16.msra.mxu0 %v551
    %765 = vmatprep.subr.bf16.mxu0 %v550
    %766 = vmatpush1.bf16.msra.mxu0 %v549
    %767 = vmatprep.subr.bf16.mxu0 %v548
    %768 = vmatpush1.bf16.msra.mxu0 %v547
    %769 = vmatprep.subr.bf16.mxu0 %v546
    %770 = vmatpush1.bf16.msra.mxu0 %v545
    %771 = vmatprep.subr.bf16.mxu0 %v544
    %772 = vmatpush1.bf16.msra.mxu0 %v543
    %773 = vmatprep.subr.bf16.mxu0 %v542
    %774 = vmatpush1.bf16.msra.mxu0 %v541
    %775 = vmatprep.subr.bf16.mxu0 %v540
    %776 = vmatpush1.bf16.msra.mxu0 %v539
    %777 = vmatprep.subr.bf16.mxu0 %v570
    %778 = vmatpush2.bf16.msra.mxu0 %v569
    %779 = vmatprep.subr.bf16.mxu0 %v568
    %780 = vmatpush2.bf16.msra.mxu0 %v567
    %781 = vmatprep.subr.bf16.mxu0 %v566
    %782 = vmatpush2.bf16.msra.mxu0 %v565
    %783 = vmatprep.subr.bf16.mxu0 %v564
    %784 = vmatpush2.bf16.msra.mxu0 %v563
    %785 = vmatprep.subr.bf16.mxu0 %v562
    %786 = vmatpush2.bf16.msra.mxu0 %v561
    %787 = vmatprep.subr.bf16.mxu0 %v560
    %788 = vmatpush2.bf16.msra.mxu0 %v559
    %789 = vmatprep.subr.bf16.mxu0 %v558
    %790 = vmatpush2.bf16.msra.mxu0 %v557
    %791 = vmatprep.subr.bf16.mxu0 %v556
    %792 = vmatpush2.bf16.msra.mxu0 %v555
    %793 = vmatprep.mubr.bf16.mxu0 %v69
    %794 = vmatmul.mubr.bf16.gmra.mxu0 %v68
    %v795 = vpop.f32.mrf.mxu0
    %v796 = vadd.f32 %v753, %v795
    %v797 = vpop.f32.mrf.mxu0
    %v798 = vadd.f32 %v755, %v797
    %v799 = vpop.f32.mrf.mxu0
    %v800 = vadd.f32 %v757, %v799
    %v801 = vpop.f32.mrf.mxu0
    %v802 = vadd.f32 %v759, %v801
    %803 = vdwg.mxu0
    %804 = vmatprep.subr.bf16.mxu0 0
    %805 = vmatpush1.bf16.msra.mxu0 0
    %806 = vmatprep.subr.bf16.mxu0 0
    %807 = vmatpush1.bf16.msra.mxu0 0
    %808 = vmatprep.subr.bf16.mxu0 0
    %809 = vmatpush1.bf16.msra.mxu0 0
    %810 = vmatprep.subr.bf16.mxu0 0
    %811 = vmatpush1.bf16.msra.mxu0 0
    %812 = vmatprep.subr.bf16.mxu0 0
    %813 = vmatpush1.bf16.msra.mxu0 0
    %814 = vmatprep.subr.bf16.mxu0 0
    %815 = vmatpush1.bf16.msra.mxu0 0
    %816 = vmatprep.subr.bf16.mxu0 0
    %817 = vmatpush1.bf16.msra.mxu0 0
    %818 = vmatprep.subr.bf16.mxu0 %v572
    %819 = vmatpush1.bf16.msra.mxu0 %v571
    %820 = vmatprep.subr.bf16.mxu0 0
    %821 = vmatpush2.bf16.msra.mxu0 0
    %822 = vmatprep.subr.bf16.mxu0 0
    %823 = vmatpush2.bf16.msra.mxu0 0
    %824 = vmatprep.subr.bf16.mxu0 0
    %825 = vmatpush2.bf16.msra.mxu0 0
    %826 = vmatprep.subr.bf16.mxu0 0
    %827 = vmatpush2.bf16.msra.mxu0 0
    %828 = vmatprep.subr.bf16.mxu0 0
    %829 = vmatpush2.bf16.msra.mxu0 0
    %830 = vmatprep.subr.bf16.mxu0 0
    %831 = vmatpush2.bf16.msra.mxu0 0
    %832 = vmatprep.subr.bf16.mxu0 0
    %833 = vmatpush2.bf16.msra.mxu0 0
    %834 = vmatprep.subr.bf16.mxu0 0
    %835 = vmatpush2.bf16.msra.mxu0 0
    %836 = vmatprep.mubr.bf16.mxu0 0
    %837 = vmatmul.mubr.bf16.gmra.mxu0 %v673
    %v838 = vpop.f32.mrf.mxu0
    %v839 = vadd.f32 %v796, %v838
    %v840 = vpop.f32.mrf.mxu0
    %v841 = vadd.f32 %v798, %v840
    %v842 = vpop.f32.mrf.mxu0
    %v843 = vadd.f32 %v800, %v842
    %v844 = vpop.f32.mrf.mxu0
    %v845 = vadd.f32 %v802, %v844
    %846 = vdwg.mxu0
    %v847 = vmax.f32 %v839, 0.0
    %v848 = vmax.f32 %v841, 0.0
    %v849 = vmax.f32 %v843, 0.0
    %v850 = vmax.f32 %v845, 0.0
    %v851 = vld [vmem:[%s3] sm:$0x3]
    %v853 = vlaneseq
    %v854 = vshrl.u32 %v853, 7
    %v855 = vsub.s32 0, %v854
    %v856 = vrot.slane %v851, %v855
    %v857 = vlaneseq
    %v858 = vshrl.u32 %v857, 7
    %v859 = vsub.s32 1, %v858
    %v860 = vrot.slane %v851, %v859
    %v863 = vmul.f32 %v847, %v856
    %v864 = vmul.f32 %v848, %v860
    %v865 = vmul.f32 %v849, %v856
    %v866 = vmul.f32 %v850, %v860
    %v867 = vadd.f32 %v863, %v864
    %868 = vadd.xlane.f32.xlu0 %v867
    %v869 = vpop.xlane.xlu0 %868
    %v870 = vadd.f32 %v865, %v866
    %871 = vadd.xlane.f32.xlu0 %v870
    %v872 = vpop.xlane.xlu0 %871
    %s873 = sld [smem:[#allocation2]]
    %v874 = vstv %s873
    %v875 = vadd.f32 %v869, %v874
    %v876 = vadd.f32 %v872, %v874
    %vm877 = vcmask 7168
    %878 = vst.msk [vmem:[%s5] sm:$0xff] %vm877, %v875
    %879 = vst.msk [vmem:[%s5 + $0x8] sm:$0xff] %vm877, %v876
    // Predicated region
    $region30: #{tpu_custom_call.1} parent=1 // pred_check
      _
    $region31: #{tpu_custom_call.1} parent=1 // pred_check_branch
      %881 = sbr.rel (0) target = $region33
    $region32: #{tpu_custom_call.1} parent=1 // pred_region
      _
    $region33: #{tpu_custom_call.1} parent=1 // pred_fallthru
      _
    // Predicated region
    $region34: #{tpu_custom_call.1} parent=1 // pred_check
      _
    $region35: #{tpu_custom_call.1} parent=1 // pred_check_branch
      %883 = sbr.rel (0) target = $region37
    $region36: #{tpu_custom_call.1} parent=1 // pred_region
      _
    $region37: #{tpu_custom_call.1} parent=1 // pred_fallthru
      _
    %884 = vsyncpa [#allocation4], 1
    %885 = vsyncpa [#allocation6], 1

</llo_original>
